<compile_context>
chip_gen: v7x
topology: tpu7x:2x2x1
jax: 0.10.0
libtpu: 0.0.40
codegen_flags: <defaults>
</compile_context>

<pallas_src>
import functools

import jax
import jax.numpy as jnp
from jax import lax
from jax.experimental import pallas as pl
from jax.experimental.pallas import tpu as pltpu

LANE = 128
TS_MAX = 1024                  # max sublane rows per tile (128K positions/step)


def _vmem_limit_bytes():
    """Per-generation VMEM budget: ~48 MiB on v7x (64 MiB), ~96 MiB on v5e/v6e."""
    cap = 64 * 1024 * 1024     # conservative fallback (v7x-sized)
    try:
        info = pltpu.get_tpu_info()
        cap = int(getattr(info, "vmem_capacity_bytes", cap) or cap)
    except Exception:
        pass
    return (cap * 3) // 4


def _row_reduce(a):
    """(TS, 128) -> (8, 128) via sublane-group adds when TS is a multiple of 8."""
    ts = a.shape[0]
    if ts <= 8 or ts % 8 != 0:
        return a
    acc = a[0:8, :]
    for r in range(8, ts, 8):
        acc = acc + a[r:r + 8, :]
    return acc


def _focal_kernel(x_ref, t_ref, w_ref, sum_ref, cnt_ref, *,
                  gamma, ignore_index, num_classes, use_weight, unroll_classes):
    i = pl.program_id(2)

    @pl.when(i == 0)
    def _():
        sum_ref[...] = jnp.zeros_like(sum_ref)
        cnt_ref[...] = jnp.zeros_like(cnt_ref)

    t = t_ref[...]                         # (TS, 128) int32 targets
    k = num_classes

    # Single fused online-softmax pass over classes with per-class loads:
    # only a handful of vregs stay live (no (K,TS,128) tile in registers) and
    # each class slice is read from VMEM exactly once.
    if unroll_classes:
        x0 = x_ref[0].astype(jnp.float32)  # (TS, 128)
        m = x0
        s = jnp.ones_like(x0)
        sel0 = t == 0
        xt = jnp.where(sel0, x0, 0.0)      # raw logit of the target class
        wt = jnp.where(sel0, w_ref[0], 0.0) if use_weight else None
        for c in range(1, k):
            xc = x_ref[c].astype(jnp.float32)
            m_new = jnp.maximum(m, xc)
            s = s * jnp.exp(m - m_new) + jnp.exp(xc - m_new)
            m = m_new
            sel = t == c
            xt = jnp.where(sel, xc, xt)
            if use_weight:
                wt = jnp.where(sel, w_ref[c], wt)
    else:
        # Large K: partially-unrolled dynamic loop instead of full unroll.
        shape = t.shape

        def body(c, carry):
            if use_weight:
                m, s, xt, wt = carry
            else:
                m, s, xt = carry
            xc = x_ref[c].astype(jnp.float32)
            m_new = jnp.maximum(m, xc)
            s = s * jnp.exp(m - m_new) + jnp.exp(xc - m_new)
            sel = t == c
            xt = jnp.where(sel, xc, xt)
            if use_weight:
                wt = jnp.where(sel, w_ref[c], wt)
                return m_new, s, xt, wt
            return m_new, s, xt

        init = (jnp.full(shape, -1e30, jnp.float32),
                jnp.zeros(shape, jnp.float32),
                jnp.zeros(shape, jnp.float32))
        if use_weight:
            init = init + (jnp.zeros(shape, jnp.float32),)
            m, s, xt, wt = lax.fori_loop(0, k, body, init, unroll=4)
        else:
            m, s, xt = lax.fori_loop(0, k, body, init, unroll=4)
            wt = None

    logpt = (xt - m) - jnp.log(s)          # log p_t
    pt = jnp.exp(logpt)
    one_m_pt = 1.0 - pt

    g = float(gamma)
    if g == 2.0:                           # common case: one VPU multiply
        mod = one_m_pt * one_m_pt
    elif g == 1.0:
        mod = one_m_pt
    elif g == 0.0:
        mod = jnp.ones_like(one_m_pt)
    elif g.is_integer() and g > 0.0:
        mod = lax.integer_pow(one_m_pt, int(g))
    else:
        mod = jnp.power(one_m_pt, g)

    logpt_w = wt * logpt if use_weight else logpt
    loss = -(mod * logpt_w)                # (TS, 128)

    # valid = real class id that isn't ignored.  Lane/row padding and ragged
    # over-reads carry the sentinel class K (or garbage targets), and invalid
    # positions are where-masked so NaN/Inf logits can't poison the sums.
    valid = jnp.logical_and(t >= 0, t < k)
    if 0 <= ignore_index < k:
        valid = jnp.logical_and(valid, t != ignore_index)
    loss = jnp.where(valid, loss, 0.0)
    cnt = jnp.where(valid, 1.0, 0.0)

    # Reduce sublanes to an 8-row block before accumulating: the resident
    # output block (and its HBM writeback) stays tiny regardless of TS.
    sum_ref[...] += _row_reduce(loss)[None, None]
    cnt_ref[...] += _row_reduce(cnt)[None, None]


def focal_loss_pallas(x, target, weight=None, ignore_index=-100,
                      reduction="mean", gamma=2.0):
    """x: [N, K, ...] float (NCHW-like); target: [N, ...] int."""
    if reduction not in ("mean", "sum"):
        # TODO(synk): reduction == "none" (per-element output) needs a
        # per-tile output spec; only 'mean' / 'sum' are emitted here.
        raise NotImplementedError("reduction must be 'mean' or 'sum'")

    n, k = int(x.shape[0]), int(x.shape[1])
    hw = 1
    for d in x.shape[2:]:
        hw *= int(d)

    # Keep logits in their source float dtype (bf16/f16 stay half-width in
    # HBM); per-class upcast happens inside the kernel.
    if (not jnp.issubdtype(x.dtype, jnp.floating)) or x.dtype.itemsize > 4:
        x = x.astype(jnp.float32)
    itemsize = x.dtype.itemsize
    gran = 8 * max(1, 4 // itemsize)       # sublane granule (16 for bf16/f16)

    x3 = x.reshape(n, k, hw)               # free, layout-preserving reshape
    t2 = target.reshape(n, hw).astype(jnp.int32)

    rows = pl.cdiv(hw, LANE)
    hw128 = rows * LANE
    if hw128 != hw:
        # Only pad x to the next multiple of 128 (needed for the reshape);
        # never pad hw up to the full row-tile extent.
        x3 = jnp.pad(x3, ((0, 0), (0, 0), (0, hw128 - hw)))
    x4 = x3.reshape(n, k, rows, LANE)

    # Row-tile size from the per-generation VMEM budget (double-buffered x+t,
    # with headroom for outputs / internal scratch).
    vmem_limit = _vmem_limit_bytes()
    tile_budget = max(1 << 20, vmem_limit - (4 << 20))
    per_row = k * LANE * itemsize + LANE * 4           # x + int32 target
    ts_cap = max(gran, min(TS_MAX, (tile_budget // (2 * per_row)) // gran * gran))
    if rows > ts_cap:
        ts = ts_cap
    elif rows <= gran or rows % gran == 0:
        ts = rows                          # single exact tile per batch
    else:
        ts = (rows // gran) * gran         # aligned tile + small ragged tail
    nb = pl.cdiv(rows, ts)                 # row-tiles actually present in x

    # Megacore: batch alone can't feed both TensorCores when N == 1, so split
    # the row-tile axis into a second parallel axis.
    splits = 2 if (n == 1 and nb >= 2) else 1
    t_per = pl.cdiv(nb, splits)
    needs_clamp = splits * t_per != nb     # some (s, i) point past the last tile

    # Target is K-times smaller than x: pad it with the sentinel class K all
    # the way to the tiled extent so ragged / over-read x rows are masked.
    rows_pad_t = splits * t_per * ts
    if rows_pad_t * LANE != hw:
        t2 = jnp.pad(t2, ((0, 0), (0, rows_pad_t * LANE - hw)),
                     constant_values=k)
    t3 = t2.reshape(n, rows_pad_t, LANE)

    use_weight = weight is not None
    w = (jnp.asarray(weight, jnp.float32).reshape(k) if use_weight
         else jnp.ones((k,), jnp.float32))

    acc_rows = 8 if (ts > 8 and ts % 8 == 0) else ts

    if needs_clamp:
        # Clamp the x row-block index so no block is fully out of bounds; the
        # duplicated reads are masked via the sentinel targets.
        def x_map(b, s, i):
            return (b, 0, jnp.minimum(s * t_per + i, nb - 1), 0)
    else:
        def x_map(b, s, i):
            return (b, 0, s * t_per + i, 0)

    kernel = functools.partial(
        _focal_kernel, gamma=float(gamma), ignore_index=int(ignore_index),
        num_classes=k, use_weight=use_weight, unroll_classes=(k <= 32))

    grid = (n, splits, t_per)
    sum_out, cnt_out = pl.pallas_call(
        kernel,
        out_shape=(jax.ShapeDtypeStruct((n, splits, acc_rows, LANE), jnp.float32),
                   jax.ShapeDtypeStruct((n, splits, acc_rows, LANE), jnp.float32)),
        grid_spec=pltpu.PrefetchScalarGridSpec(
            num_scalar_prefetch=0,
            grid=grid,
            in_specs=[
                # logits tile: (K, TS, 128) seen by the kernel, source dtype.
                # TODO(synk): if profiling shows exposed DMA on v5e, add
                # pipeline_mode=pl.Buffered(3) here (budget permitting).
                pl.BlockSpec((None, k, ts, LANE), x_map),
                # target tile: (TS, 128) int32, fully sentinel-padded.
                pl.BlockSpec((None, ts, LANE),
                             lambda b, s, i: (b, s * t_per + i, 0)),
                # class weights: tiny, scalar-read per class from SMEM.
                pl.BlockSpec(memory_space=pltpu.MemorySpace.SMEM),
            ],
            out_specs=(
                pl.BlockSpec((1, 1, acc_rows, LANE), lambda b, s, i: (b, s, 0, 0)),
                pl.BlockSpec((1, 1, acc_rows, LANE), lambda b, s, i: (b, s, 0, 0)),
            ),
        ),
        compiler_params=pltpu.CompilerParams(
            # batch & row-split axes parallel (distinct output blocks) -> both
            # TCs on v7x; the row-tile axis carries the accumulator.
            dimension_semantics=("parallel", "parallel", "arbitrary"),
            vmem_limit_bytes=int(vmem_limit),
        ),
    )(x4, t3, w)

    total = jnp.sum(sum_out)
    if reduction == "sum":
        return total
    # 'mean': 0/0 -> nan if every position is ignored (matches torch's mean
    # over an empty selection).
    return total / jnp.sum(cnt_out)


def focal_loss_ref(x, target, weight=None, ignore_index=-100,
                   reduction="mean", gamma=2.0):
    """Pure-JAX reference mirroring the PyTorch semantics."""
    k = x.shape[1]
    logp = jax.nn.log_softmax(x.astype(jnp.float32), axis=1)
    logp = jnp.moveaxis(logp, 1, -1).reshape(-1, k)        # (P, K)
    t = target.reshape(-1)
    logpt = jnp.take_along_axis(logp, t[:, None], axis=1)[:, 0]
    valid = jnp.ones_like(t, dtype=bool)
    if 0 <= ignore_index < k:
        valid = t != ignore_index
    pt = jnp.exp(logpt)
    if weight is not None:
        logpt = jnp.asarray(weight, jnp.float32)[t] * logpt
    loss = -1.0 * (1.0 - pt) ** gamma * logpt
    if reduction == "sum":
        return jnp.sum(jnp.where(valid, loss, 0.0))
    return jnp.sum(jnp.where(valid, loss, 0.0)) / jnp.sum(valid)


if __name__ == "__main__":
    # FocalLoss(gamma=2.0, weight=[...], ignore_index=-100, reduction='mean')
    N, K, H, W = 2, 4, 16, 16
    gamma = 2.0
    ignore_index = -100
    reduction = "mean"
    class_weight = jnp.array([0.4, 0.9, 1.1, 0.6], jnp.float32)

    key = jax.random.PRNGKey(0)
    kx, kt = jax.random.split(key)
    x = jax.random.normal(kx, (N, K, H, W), jnp.float32)
    target = jax.random.randint(kt, (N, H, W), 0, K, jnp.int32)

    loss = focal_loss_pallas(x, target, class_weight, ignore_index,
                             reduction, gamma)
    loss = jax.block_until_ready(loss)

    ref = focal_loss_ref(x, target, class_weight, ignore_index,
                         reduction, gamma)
    assert jnp.allclose(loss, ref, rtol=1e-5, atol=1e-5), (loss, ref)
    print("KERNEL_OK")
</pallas_src>

<mosaic_0001>
module attributes {stable_mosaic.version = 11 : i64} {
  func.func @_focal_kernel(%arg0: i32, %arg1: i32, %arg2: i32, %arg3: memref<1x4x2x128xf32, #tpu.memory_space<vmem>>, %arg4: memref<1x2x128xi32, #tpu.memory_space<vmem>>, %arg5: memref<4xf32, #tpu.memory_space<smem>>, %arg6: memref<1x1x2x128xf32, #tpu.memory_space<vmem>>, %arg7: memref<1x1x2x128xf32, #tpu.memory_space<vmem>>) attributes {dimension_semantics = [#tpu.dimension_semantics<parallel>, #tpu.dimension_semantics<parallel>, #tpu.dimension_semantics<arbitrary>], iteration_bounds = array<i64: 2, 1, 1>, scalar_prefetch = 0 : i64, scratch_operands = 0 : i64, tpu.core_type = #tpu.core_type<tc>, window_params = [{transform_indices = @transform_0, window_bounds = array<i64: 1, 4, 2, 128>}, {transform_indices = @transform_1, window_bounds = array<i64: 1, 2, 128>}, {transform_indices = @transform_2, window_bounds = array<i64: 4>}, {transform_indices = @transform_3, window_bounds = array<i64: 1, 1, 2, 128>}, {transform_indices = @transform_4, window_bounds = array<i64: 1, 1, 2, 128>}]} {
    %c0_i32 = arith.constant 0 : i32
    %0 = arith.cmpi eq, %arg2, %c0_i32 : i32
    %1 = arith.extui %0 : i1 to i32
    %c0_i32_0 = arith.constant 0 : i32
    %2 = arith.cmpi ne, %1, %c0_i32_0 : i32
    scf.if %2 {
      %cst_45 = arith.constant 0.000000e+00 : f32
      %90 = vector.broadcast %cst_45 : f32 to vector<1x1x2x128xf32>
      %c0_46 = arith.constant 0 : index
      %c0_47 = arith.constant 0 : index
      %c0_48 = arith.constant 0 : index
      %c0_49 = arith.constant 0 : index
      %91 = vector.load %arg6[%c0_46, %c0_47, %c0_48, %c0_49] : memref<1x1x2x128xf32, #tpu.memory_space<vmem>>, vector<1x1x2x128xf32>
      tpu.vector_store %arg6[%c0_46, %c0_47, %c0_48, %c0_49], %90 {strides = array<i32>} : memref<1x1x2x128xf32, #tpu.memory_space<vmem>>, vector<1x1x2x128xf32>,
      %cst_50 = arith.constant 0.000000e+00 : f32
      %92 = vector.broadcast %cst_50 : f32 to vector<1x1x2x128xf32>
      %c0_51 = arith.constant 0 : index
      %c0_52 = arith.constant 0 : index
      %c0_53 = arith.constant 0 : index
      %c0_54 = arith.constant 0 : index
      %93 = vector.load %arg7[%c0_51, %c0_52, %c0_53, %c0_54] : memref<1x1x2x128xf32, #tpu.memory_space<vmem>>, vector<1x1x2x128xf32>
      tpu.vector_store %arg7[%c0_51, %c0_52, %c0_53, %c0_54], %92 {strides = array<i32>} : memref<1x1x2x128xf32, #tpu.memory_space<vmem>>, vector<1x1x2x128xf32>,
    } else {
    }
    %c0 = arith.constant 0 : index
    %c0_1 = arith.constant 0 : index
    %c0_2 = arith.constant 0 : index
    %3 = vector.load %arg4[%c0, %c0_1, %c0_2] : memref<1x2x128xi32, #tpu.memory_space<vmem>>, vector<1x2x128xi32>
    %4 = vector.shape_cast %3 : vector<1x2x128xi32> to vector<2x128xi32>
    %c0_3 = arith.constant 0 : index
    %c0_4 = arith.constant 0 : index
    %c0_5 = arith.constant 0 : index
    %c0_6 = arith.constant 0 : index
    %5 = vector.load %arg3[%c0_3, %c0_4, %c0_5, %c0_6] : memref<1x4x2x128xf32, #tpu.memory_space<vmem>>, vector<1x1x2x128xf32>
    %6 = vector.shape_cast %5 : vector<1x1x2x128xf32> to vector<2x128xf32>
    %cst = arith.constant 1.000000e+00 : f32
    %7 = vector.broadcast %cst : f32 to vector<2x128xf32>
    %c0_i32_7 = arith.constant 0 : i32
    %8 = vector.broadcast %c0_i32_7 : i32 to vector<2x128xi32>
    %9 = arith.cmpi eq, %4, %8 : vector<2x128xi32>
    %cst_8 = arith.constant 0.000000e+00 : f32
    %10 = vector.broadcast %cst_8 : f32 to vector<2x128xf32>
    %11 = arith.select %9, %6, %10 : vector<2x128xi1>, vector<2x128xf32>
    %c0_9 = arith.constant 0 : index
    %12 = memref.load %arg5[%c0_9] : memref<4xf32, #tpu.memory_space<smem>>
    %cst_10 = arith.constant 0.000000e+00 : f32
    %13 = vector.broadcast %12 : f32 to vector<2x128xf32>
    %14 = vector.broadcast %cst_10 : f32 to vector<2x128xf32>
    %15 = arith.select %9, %13, %14 : vector<2x128xi1>, vector<2x128xf32>
    %c0_11 = arith.constant 0 : index
    %c1 = arith.constant 1 : index
    %c0_12 = arith.constant 0 : index
    %c0_13 = arith.constant 0 : index
    %16 = vector.load %arg3[%c0_11, %c1, %c0_12, %c0_13] : memref<1x4x2x128xf32, #tpu.memory_space<vmem>>, vector<1x1x2x128xf32>
    %17 = vector.shape_cast %16 : vector<1x1x2x128xf32> to vector<2x128xf32>
    %18 = arith.maximumf %6, %17 : vector<2x128xf32>
    %19 = arith.subf %6, %18 : vector<2x128xf32>
    %20 = math.exp %19 : vector<2x128xf32>
    %21 = arith.mulf %7, %20 : vector<2x128xf32>
    %22 = arith.subf %17, %18 : vector<2x128xf32>
    %23 = math.exp %22 : vector<2x128xf32>
    %24 = arith.addf %21, %23 : vector<2x128xf32>
    %c1_i32 = arith.constant 1 : i32
    %25 = vector.broadcast %c1_i32 : i32 to vector<2x128xi32>
    %26 = arith.cmpi eq, %4, %25 : vector<2x128xi32>
    %27 = arith.select %26, %17, %11 : vector<2x128xi1>, vector<2x128xf32>
    %c1_14 = arith.constant 1 : index
    %28 = memref.load %arg5[%c1_14] : memref<4xf32, #tpu.memory_space<smem>>
    %29 = vector.broadcast %28 : f32 to vector<2x128xf32>
    %30 = arith.select %26, %29, %15 : vector<2x128xi1>, vector<2x128xf32>
    %c0_15 = arith.constant 0 : index
    %c2 = arith.constant 2 : index
    %c0_16 = arith.constant 0 : index
    %c0_17 = arith.constant 0 : index
    %31 = vector.load %arg3[%c0_15, %c2, %c0_16, %c0_17] : memref<1x4x2x128xf32, #tpu.memory_space<vmem>>, vector<1x1x2x128xf32>
    %32 = vector.shape_cast %31 : vector<1x1x2x128xf32> to vector<2x128xf32>
    %33 = arith.maximumf %18, %32 : vector<2x128xf32>
    %34 = arith.subf %18, %33 : vector<2x128xf32>
    %35 = math.exp %34 : vector<2x128xf32>
    %36 = arith.mulf %24, %35 : vector<2x128xf32>
    %37 = arith.subf %32, %33 : vector<2x128xf32>
    %38 = math.exp %37 : vector<2x128xf32>
    %39 = arith.addf %36, %38 : vector<2x128xf32>
    %c2_i32 = arith.constant 2 : i32
    %40 = vector.broadcast %c2_i32 : i32 to vector<2x128xi32>
    %41 = arith.cmpi eq, %4, %40 : vector<2x128xi32>
    %42 = arith.select %41, %32, %27 : vector<2x128xi1>, vector<2x128xf32>
    %c2_18 = arith.constant 2 : index
    %43 = memref.load %arg5[%c2_18] : memref<4xf32, #tpu.memory_space<smem>>
    %44 = vector.broadcast %43 : f32 to vector<2x128xf32>
    %45 = arith.select %41, %44, %30 : vector<2x128xi1>, vector<2x128xf32>
    %c0_19 = arith.constant 0 : index
    %c3 = arith.constant 3 : index
    %c0_20 = arith.constant 0 : index
    %c0_21 = arith.constant 0 : index
    %46 = vector.load %arg3[%c0_19, %c3, %c0_20, %c0_21] : memref<1x4x2x128xf32, #tpu.memory_space<vmem>>, vector<1x1x2x128xf32>
    %47 = vector.shape_cast %46 : vector<1x1x2x128xf32> to vector<2x128xf32>
    %48 = arith.maximumf %33, %47 : vector<2x128xf32>
    %49 = arith.subf %33, %48 : vector<2x128xf32>
    %50 = math.exp %49 : vector<2x128xf32>
    %51 = arith.mulf %39, %50 : vector<2x128xf32>
    %52 = arith.subf %47, %48 : vector<2x128xf32>
    %53 = math.exp %52 : vector<2x128xf32>
    %54 = arith.addf %51, %53 : vector<2x128xf32>
    %c3_i32 = arith.constant 3 : i32
    %55 = vector.broadcast %c3_i32 : i32 to vector<2x128xi32>
    %56 = arith.cmpi eq, %4, %55 : vector<2x128xi32>
    %57 = arith.select %56, %47, %42 : vector<2x128xi1>, vector<2x128xf32>
    %c3_22 = arith.constant 3 : index
    %58 = memref.load %arg5[%c3_22] : memref<4xf32, #tpu.memory_space<smem>>
    %59 = vector.broadcast %58 : f32 to vector<2x128xf32>
    %60 = arith.select %56, %59, %45 : vector<2x128xi1>, vector<2x128xf32>
    %61 = arith.subf %57, %48 : vector<2x128xf32>
    %62 = math.log %54 : vector<2x128xf32>
    %63 = arith.subf %61, %62 : vector<2x128xf32>
    %64 = math.exp %63 : vector<2x128xf32>
    %cst_23 = arith.constant 1.000000e+00 : f32
    %65 = vector.broadcast %cst_23 : f32 to vector<2x128xf32>
    %66 = arith.subf %65, %64 : vector<2x128xf32>
    %67 = arith.mulf %66, %66 : vector<2x128xf32>
    %68 = arith.mulf %60, %63 : vector<2x128xf32>
    %69 = arith.mulf %67, %68 : vector<2x128xf32>
    %cst_24 = arith.constant 0.000000e+00 : f32
    %70 = vector.broadcast %cst_24 : f32 to vector<2x128xf32>
    %71 = arith.subf %70, %69 : vector<2x128xf32>
    %c0_i32_25 = arith.constant 0 : i32
    %72 = vector.broadcast %c0_i32_25 : i32 to vector<2x128xi32>
    %73 = arith.cmpi sge, %4, %72 : vector<2x128xi32>
    %c4_i32 = arith.constant 4 : i32
    %74 = vector.broadcast %c4_i32 : i32 to vector<2x128xi32>
    %75 = arith.cmpi slt, %4, %74 : vector<2x128xi32>
    %76 = arith.andi %73, %75 : vector<2x128xi1>
    %cst_26 = arith.constant 0.000000e+00 : f32
    %77 = vector.broadcast %cst_26 : f32 to vector<2x128xf32>
    %78 = arith.select %76, %71, %77 : vector<2x128xi1>, vector<2x128xf32>
    %cst_27 = arith.constant 1.000000e+00 : f32
    %cst_28 = arith.constant 0.000000e+00 : f32
    %79 = vector.broadcast %cst_27 : f32 to vector<2x128xf32>
    %80 = vector.broadcast %cst_28 : f32 to vector<2x128xf32>
    %81 = arith.select %76, %79, %80 : vector<2x128xi1>, vector<2x128xf32>
    %c0_29 = arith.constant 0 : index
    %c0_30 = arith.constant 0 : index
    %c0_31 = arith.constant 0 : index
    %c0_32 = arith.constant 0 : index
    %82 = vector.load %arg6[%c0_29, %c0_30, %c0_31, %c0_32] : memref<1x1x2x128xf32, #tpu.memory_space<vmem>>, vector<1x1x2x128xf32>
    %83 = vector.shape_cast %78 : vector<2x128xf32> to vector<1x1x2x128xf32>
    %84 = arith.addf %82, %83 : vector<1x1x2x128xf32>
    %c0_33 = arith.constant 0 : index
    %c0_34 = arith.constant 0 : index
    %c0_35 = arith.constant 0 : index
    %c0_36 = arith.constant 0 : index
    %85 = vector.load %arg6[%c0_33, %c0_34, %c0_35, %c0_36] : memref<1x1x2x128xf32, #tpu.memory_space<vmem>>, vector<1x1x2x128xf32>
    tpu.vector_store %arg6[%c0_33, %c0_34, %c0_35, %c0_36], %84 {strides = array<i32>} : memref<1x1x2x128xf32, #tpu.memory_space<vmem>>, vector<1x1x2x128xf32>,
    %c0_37 = arith.constant 0 : index
    %c0_38 = arith.constant 0 : index
    %c0_39 = arith.constant 0 : index
    %c0_40 = arith.constant 0 : index
    %86 = vector.load %arg7[%c0_37, %c0_38, %c0_39, %c0_40] : memref<1x1x2x128xf32, #tpu.memory_space<vmem>>, vector<1x1x2x128xf32>
    %87 = vector.shape_cast %81 : vector<2x128xf32> to vector<1x1x2x128xf32>
    %88 = arith.addf %86, %87 : vector<1x1x2x128xf32>
    %c0_41 = arith.constant 0 : index
    %c0_42 = arith.constant 0 : index
    %c0_43 = arith.constant 0 : index
    %c0_44 = arith.constant 0 : index
    %89 = vector.load %arg7[%c0_41, %c0_42, %c0_43, %c0_44] : memref<1x1x2x128xf32, #tpu.memory_space<vmem>>, vector<1x1x2x128xf32>
    tpu.vector_store %arg7[%c0_41, %c0_42, %c0_43, %c0_44], %88 {strides = array<i32>} : memref<1x1x2x128xf32, #tpu.memory_space<vmem>>, vector<1x1x2x128xf32>,
    return
  }
  func.func @transform_0(%arg0: i32, %arg1: i32, %arg2: i32) -> (i32, i32, i32, i32) {
    %c1_i32 = arith.constant 1 : i32
    %0 = arith.muli %arg1, %c1_i32 : i32
    %1 = arith.addi %0, %arg2 : i32
    %c0_i32 = arith.constant 0 : i32
    %c0_i32_0 = arith.constant 0 : i32
    %c0_i32_1 = arith.constant 0 : i32
    return %arg0, %c0_i32, %1, %c0_i32_0 : i32, i32, i32, i32
  }
  func.func @transform_1(%arg0: i32, %arg1: i32, %arg2: i32) -> (i32, i32, i32) {
    %c1_i32 = arith.constant 1 : i32
    %0 = arith.muli %arg1, %c1_i32 : i32
    %1 = arith.addi %0, %arg2 : i32
    %c0_i32 = arith.constant 0 : i32
    %c0_i32_0 = arith.constant 0 : i32
    return %arg0, %1, %c0_i32 : i32, i32, i32
  }
  func.func @transform_2(%arg0: i32, %arg1: i32, %arg2: i32) -> i32 {
    %c0_i32 = arith.constant 0 : i32
    %c0_i32_0 = arith.constant 0 : i32
    return %c0_i32 : i32
  }
  func.func @transform_3(%arg0: i32, %arg1: i32, %arg2: i32) -> (i32, i32, i32, i32) {
    %c0_i32 = arith.constant 0 : i32
    %c0_i32_0 = arith.constant 0 : i32
    %c0_i32_1 = arith.constant 0 : i32
    return %arg0, %arg1, %c0_i32, %c0_i32_0 : i32, i32, i32, i32
  }
  func.func @transform_4(%arg0: i32, %arg1: i32, %arg2: i32) -> (i32, i32, i32, i32) {
    %c0_i32 = arith.constant 0 : i32
    %c0_i32_0 = arith.constant 0 : i32
    %c0_i32_1 = arith.constant 0 : i32
    return %arg0, %arg1, %c0_i32, %c0_i32_0 : i32, i32, i32, i32
  }
}

</mosaic_0001>

<llo_original>
// kernel: tpu_custom_call.1
$region0: #{tpu_custom_call.1}
  #allocation0 [shape = 'u32[]', space=smem, size = 0x4, offset = 0x4, fixed_abs, tag = 'smem constant byte address 0x4 - core index']
  #allocation1 [shape = 'u32[144,128]{1,0:T(1,128)}', space=vmem, size = 0x12000, scoped, tag = 'internal scratch']
  %s0 = inlined_call_operand.hbm [shape: f32[2,4,2,128], index: 0, kind: input, shape index: {}]
  %s1 = inlined_call_operand.hbm [shape: s32[2,2,128], index: 1, kind: input, shape index: {}]
  %s2 = inlined_call_operand.vmem [shape: f32[4], index: 2, kind: input, shape index: {}]
  %s3 = inlined_call_operand.hbm [shape: f32[2,1,2,128], index: 3, kind: output, shape index: {0}]
  %s4 = inlined_call_operand.hbm [shape: f32[2,1,2,128], index: 4, kind: output, shape index: {1}]
  %5 = xla_tuple %s3, %s4
  %s6 = sld [smem:[#allocation0]]
  $region69: #{tpu_custom_call.1} parent=0
    _
  %s8 = ssub.s32 1, %s6
  %s9 = scalar_select 0, %s8, %s6
  $region1: #{tpu_custom_call.1} parent=0
    #allocation2 [shape = 'u8[8192]{0}', space=vmem, size = 0x2000, scoped, tag = 'input window, operand 0']
    #allocation3 [shape = 's32[2]{0}', space=sflag, size = 0x8, scoped, tag = 'scoped memory for tpu_custom_call.1']
    #allocation4 [shape = 's32[2]{0}', space=sflag, size = 0x8, scoped, tag = 'scoped memory for tpu_custom_call.1']
    #allocation5 [shape = 's32[2]{0}', space=sflag, size = 0x8, scoped, tag = 'scoped memory for tpu_custom_call.1']
    #allocation6 [shape = 'u8[2048]{0}', space=vmem, size = 0x800, scoped, tag = 'input window, operand 1']
    #allocation7 [shape = 's32[2]{0}', space=sflag, size = 0x8, scoped, tag = 'scoped memory for tpu_custom_call.1']
    #allocation8 [shape = 'u8[512]{0}', space=smem, size = 0x200, scoped, tag = 'input window, operand 2, single buffered']
    #allocation9 [shape = 'u8[2048]{0}', space=vmem, size = 0x800, scoped, tag = 'output window, operand 0']
    #allocation10 [shape = 'u8[2048]{0}', space=vmem, size = 0x800, scoped, tag = 'output window, operand 1']
    #allocation11 [shape = 's32[2]{0}', space=sflag, size = 0x8, scoped, tag = 'scoped memory for tpu_custom_call.1']
    %10 = vsyncpa [#allocation3], 0
    %s11 = scalar_lea.sflag [#allocation3], 1
    %12 = vsyncpa %s11, 0
    %13 = vsyncpa [#allocation7], 0
    %s14 = scalar_lea.sflag [#allocation7], 1
    %15 = vsyncpa %s14, 0
    %16 = vsyncpa [#allocation5], 0
    %17 = vsyncpa [#allocation4], 0
    %s18 = scalar_lea.sflag [#allocation4], 1
    %19 = vsyncpa %s18, 0
    %20 = vsyncpa [#allocation11], 0
    %s21 = scalar_lea.sflag [#allocation11], 1
    %22 = vsyncpa %s21, 0
    loop: start=0, step=1, limit=4
    $region2: #{tpu_custom_call.1} parent=1 // loop_pre_header
      _
    $region3: #{tpu_custom_call.1} parent=1 // loop_header
      %s24 = sphi 0, %s28
      %p25 = scmp.ge.s32.totalorder %s24, 4
      %s31 = sphi 0, %s50
      %s32 = sphi 0, %s46
      %s33 = sphi 0, %s42
      %s34 = sphi 0, %s31
      %s35 = sphi 0, %s32
      %s36 = sphi 0, %s33
      %s37 = sphi 0, %s34
      %s38 = sphi 0, %s35
      %s39 = sphi 0, %s36
      %s57 = sphi 0, %s59
      %s60 = sphi 0, %s57
      %s61 = sphi 0, %s60
      %s77 = sphi 0, %s61
      %s87 = sphi 0, %s89
      %s90 = sphi 0, %s87
      %s91 = sphi 0, %s90
      %s107 = sphi 0, %s91
      %s111 = sphi 0, %s111
      %s113 = sphi 0, %s111
      %s114 = sphi 0, %s113
      %s128 = sphi 0, %s114
      %s136 = sphi 0, %s138
      %s139 = sphi 0, %s136
      %s140 = sphi 0, %s139
      %s156 = sphi 0, %s140
      %s164 = sphi 0, %s166
      %s167 = sphi 0, %s164
      %s168 = sphi 0, %s167
      %s184 = sphi 0, %s168
    $region4: #{tpu_custom_call.1} parent=1 // loop_header_branch
      %27 = sbr.rel (%p25) target = $region8
    $region5: #{tpu_custom_call.1} parent=1 // loop_body
      %s29 = ssub.s32 %s24, 1
      %s30 = ssub.s32 %s24, 2
      %s40 = sadd.s32 1, %s33
      %p41 = scmp.ge.s32.totalorder %s40, 1
      %s42 = scalar_select %p41, 0, %s40
      %s43 = sadd.s32 1, %s32
      %s44 = scalar_select %p41, %s43, %s32
      %p45 = scmp.ge.s32.totalorder %s44, 1
      %s46 = scalar_select %p45, 0, %s44
      %s47 = sadd.s32 1, %s31
      %s48 = scalar_select %p45, %s47, %s31
      %p49 = scmp.ge.s32.totalorder %s48, 2
      %s50 = scalar_select %p49, 0, %s48
      %s51 = sadd.s32 %s32, %s33
      %s52 = sadd.s32 %s46, %s42
      %s53 = ssub.s32 %s31, %s50
      %s54 = ssub.s32 %s51, %s52
      %s55 = sor.u32 %s53, %s54
      %p56 = scmp.eq.s32.totalorder %s55, 0
      %s58 = sadd.s32 %s57, 1
      %s59 = scalar_select %p56, %s57, %s58
      %p62 = pneg %p56
      %p63 = scmp.eq.s32.totalorder %s24, 1
      %p64 = por %p62, %p63
      %p65 = scmp.ne.s32.totalorder %s57, %s60
      %p66 = scmp.eq.s32.totalorder %s24, 0
      %p67 = por %p65, %p66
      %p68 = scmp.ne.s32.totalorder %s57, %s60
      %p69 = scmp.eq.s32.totalorder %s29, 1
      %p70 = por %p68, %p69
      %p71 = scmp.ne.s32.totalorder %s60, %s61
      %p72 = scmp.eq.s32.totalorder %s29, 0
      %p73 = por %p71, %p72
      %p74 = scmp.ne.s32.totalorder %s60, %s61
      %p75 = scmp.eq.s32.totalorder %s30, 1
      %p76 = por %p74, %p75
      %p78 = scmp.ne.s32.totalorder %s61, %s77
      %p79 = scmp.eq.s32.totalorder %s30, 0
      %p80 = por %p78, %p79
      %s81 = sadd.s32 %s32, %s33
      %s82 = sadd.s32 %s46, %s42
      %s83 = ssub.s32 %s31, %s50
      %s84 = ssub.s32 %s81, %s82
      %s85 = sor.u32 %s83, %s84
      %p86 = scmp.eq.s32.totalorder %s85, 0
      %s88 = sadd.s32 %s87, 1
      %s89 = scalar_select %p86, %s87, %s88
      %p92 = pneg %p86
      %p93 = scmp.eq.s32.totalorder %s24, 1
      %p94 = por %p92, %p93
      %p95 = scmp.ne.s32.totalorder %s87, %s90
      %p96 = scmp.eq.s32.totalorder %s24, 0
      %p97 = por %p95, %p96
      %p98 = scmp.ne.s32.totalorder %s87, %s90
      %p99 = scmp.eq.s32.totalorder %s29, 1
      %p100 = por %p98, %p99
      %p101 = scmp.ne.s32.totalorder %s90, %s91
      %p102 = scmp.eq.s32.totalorder %s29, 0
      %p103 = por %p101, %p102
      %p104 = scmp.ne.s32.totalorder %s90, %s91
      %p105 = scmp.eq.s32.totalorder %s30, 1
      %p106 = por %p104, %p105
      %p108 = scmp.ne.s32.totalorder %s91, %s107
      %p109 = scmp.eq.s32.totalorder %s30, 0
      %p110 = por %p108, %p109
      %s112 = sadd.s32 %s111, 1
      %p115 = scmp.eq.s32.totalorder %s24, 1
      %p116 = scmp.ne.s32.totalorder %s111, %s113
      %p117 = scmp.eq.s32.totalorder %s24, 0
      %p118 = por %p116, %p117
      %p119 = scmp.ne.s32.totalorder %s111, %s113
      %p120 = scmp.eq.s32.totalorder %s29, 1
      %p121 = por %p119, %p120
      %p122 = scmp.ne.s32.totalorder %s113, %s114
      %p123 = scmp.eq.s32.totalorder %s29, 0
      %p124 = por %p122, %p123
      %p125 = scmp.ne.s32.totalorder %s113, %s114
      %p126 = scmp.eq.s32.totalorder %s30, 1
      %p127 = por %p125, %p126
      %p129 = scmp.ne.s32.totalorder %s114, %s128
      %p130 = scmp.eq.s32.totalorder %s30, 0
      %p131 = por %p129, %p130
      %s132 = ssub.s32 %s31, %s50
      %s133 = ssub.s32 %s32, %s46
      %s134 = sor.u32 %s132, %s133
      %p135 = scmp.eq.s32.totalorder %s134, 0
      %s137 = sadd.s32 %s136, 1
      %s138 = scalar_select %p135, %s136, %s137
      %p141 = pneg %p135
      %p142 = scmp.eq.s32.totalorder %s24, 1
      %p143 = por %p141, %p142
      %p144 = scmp.ne.s32.totalorder %s136, %s139
      %p145 = scmp.eq.s32.totalorder %s24, 0
      %p146 = por %p144, %p145
      %p147 = scmp.ne.s32.totalorder %s136, %s139
      %p148 = scmp.eq.s32.totalorder %s29, 1
      %p149 = por %p147, %p148
      %p150 = scmp.ne.s32.totalorder %s139, %s140
      %p151 = scmp.eq.s32.totalorder %s29, 0
      %p152 = por %p150, %p151
      %p153 = scmp.ne.s32.totalorder %s139, %s140
      %p154 = scmp.eq.s32.totalorder %s30, 1
      %p155 = por %p153, %p154
      %p157 = scmp.ne.s32.totalorder %s140, %s156
      %p158 = scmp.eq.s32.totalorder %s30, 0
      %p159 = por %p157, %p158
      %s160 = ssub.s32 %s31, %s50
      %s161 = ssub.s32 %s32, %s46
      %s162 = sor.u32 %s160, %s161
      %p163 = scmp.eq.s32.totalorder %s162, 0
      %s165 = sadd.s32 %s164, 1
      %s166 = scalar_select %p163, %s164, %s165
      %p169 = pneg %p163
      %p170 = scmp.eq.s32.totalorder %s24, 1
      %p171 = por %p169, %p170
      %p172 = scmp.ne.s32.totalorder %s164, %s167
      %p173 = scmp.eq.s32.totalorder %s24, 0
      %p174 = por %p172, %p173
      %p175 = scmp.ne.s32.totalorder %s164, %s167
      %p176 = scmp.eq.s32.totalorder %s29, 1
      %p177 = por %p175, %p176
      %p178 = scmp.ne.s32.totalorder %s167, %s168
      %p179 = scmp.eq.s32.totalorder %s29, 0
      %p180 = por %p178, %p179
      %p181 = scmp.ne.s32.totalorder %s167, %s168
      %p182 = scmp.eq.s32.totalorder %s30, 1
      %p183 = por %p181, %p182
      %p185 = scmp.ne.s32.totalorder %s168, %s184
      %p186 = scmp.eq.s32.totalorder %s30, 0
      %p187 = por %p185, %p186
      %p188 = scmp.le.s32.totalorder 1, %s24
      %p189 = scmp.lt.s32.totalorder %s24, 3
      %p190 = pnand %p188, %p189
      %p191 = pneg %p190
      // Predicated region
      $region9: #{tpu_custom_call.1} parent=5 // pred_check
        _
      $region10: #{tpu_custom_call.1} parent=5 // pred_check_branch
        %193 = sbr.rel (%p190) target = $region12
      $region11: #{tpu_custom_call.1} parent=5 // pred_region
        %s194 = ssub.s32 %s24, 1
        // Predicated region
        $region13: #{tpu_custom_call.1} parent=11 // pred_check
          %p195 = pneg %p124
        $region14: #{tpu_custom_call.1} parent=11 // pred_check_branch
          %197 = sbr.rel (%p195) target = $region16
        $region15: #{tpu_custom_call.1} parent=11 // pred_region
          %s199 = ssub.s32 16, 16
          %200 = vsyncadd [#allocation5], %s199
          %s202 = sshll.u32 %s2, 4
          %s203 = int_to_ptr.vmem [resolvable:$true] %s202
          %205 = dma.vmem_to_smem %s203, 16, [#allocation8], [#allocation5]
        $region16: #{tpu_custom_call.1} parent=11 // pred_fallthru
          _
      $region12: #{tpu_custom_call.1} parent=5 // pred_fallthru
        _
      %p206 = scmp.lt.s32.totalorder %s24, 2
      // Predicated region
      $region17: #{tpu_custom_call.1} parent=5 // pred_check
        %p207 = pneg %p206
      $region18: #{tpu_custom_call.1} parent=5 // pred_check_branch
        %209 = sbr.rel (%p207) target = $region20
      $region19: #{tpu_custom_call.1} parent=5 // pred_region
        // Predicated region
        $region21: #{tpu_custom_call.1} parent=19 // pred_check
          %p210 = pneg %p67
        $region22: #{tpu_custom_call.1} parent=19 // pred_check_branch
          %212 = sbr.rel (%p210) target = $region24
        $region23: #{tpu_custom_call.1} parent=19 // pred_region
          %s213 = sand.u32 %s57, 1
          %s214 = scalar_lea.sflag [#allocation3], %s213
          %s215 = sand.u32 %s57, 1
          %s216 = smul.addr %s215, 8
          %s217 = scalar_lea.vmem [#allocation2], %s216
          %s218 = sadd.s32 %s32, %s33
          %s220 = ssub.s32 128, 128
          %221 = vsyncadd %s214, %s220
          %s222 = smul.addr %s31, 4
          %s223 = sadd.s32 %s218, %s222
          %s224 = smul.addr %s223, 32
          %s225 = scalar_lea.hbm %s0, %s224
          %s226 = sshll.u32 %s217, 4
          %s227 = int_to_ptr.vmem [resolvable:$true] %s226
          %232 = dma.hbm_to_vmem [thread:$0]  %s225, 128, %s227, %s214, 32, 32, 2
        $region24: #{tpu_custom_call.1} parent=19 // pred_fallthru
          _
        // Predicated region
        $region25: #{tpu_custom_call.1} parent=19 // pred_check
          %p233 = pneg %p97
        $region26: #{tpu_custom_call.1} parent=19 // pred_check_branch
          %235 = sbr.rel (%p233) target = $region28
        $region27: #{tpu_custom_call.1} parent=19 // pred_region
          %s236 = sand.u32 %s87, 1
          %s237 = scalar_lea.sflag [#allocation7], %s236
          %s238 = sand.u32 %s87, 1
          %s239 = smul.addr %s238, 2
          %s240 = scalar_lea.vmem [#allocation6], %s239
          %s241 = sadd.s32 %s32, %s33
          %s243 = ssub.s32 32, 32
          %244 = vsyncadd %s237, %s243
          %s245 = sadd.s32 %s241, %s31
          %s246 = smul.addr %s245, 32
          %s247 = scalar_lea.hbm %s1, %s246
          %s249 = sshll.u32 %s240, 4
          %s250 = int_to_ptr.vmem [resolvable:$true] %s249
          %252 = dma.hbm_to_vmem [thread:$0]  %s247, 32, %s250, %s237
        $region28: #{tpu_custom_call.1} parent=19 // pred_fallthru
          _
      $region20: #{tpu_custom_call.1} parent=5 // pred_fallthru
        _
      %p253 = scmp.le.s32.totalorder 1, %s24
      %p254 = scmp.lt.s32.totalorder %s24, 3
      %p255 = pnand %p253, %p254
      %p256 = pneg %p255
      // Predicated region
      $region29: #{tpu_custom_call.1} parent=5 // pred_check
        _
      $region30: #{tpu_custom_call.1} parent=5 // pred_check_branch
        %258 = sbr.rel (%p255) target = $region32
      $region31: #{tpu_custom_call.1} parent=5 // pred_region
        %s259 = ssub.s32 %s24, 1
        %s260 = sand.u32 %s60, 1
        %s261 = scalar_lea.sflag [#allocation3], %s260
        %s262 = sand.u32 %s60, 1
        %s263 = smul.addr %s262, 8
        %s264 = scalar_lea.vmem [#allocation2], %s263
        // Predicated region
        $region33: #{tpu_custom_call.1} parent=31 // pred_check
          %p265 = pneg %p73
        $region34: #{tpu_custom_call.1} parent=31 // pred_check_branch
          %267 = sbr.rel (%p265) target = $region36
        $region35: #{tpu_custom_call.1} parent=31 // pred_region
          %268 = dma.done %s261, 128
        $region36: #{tpu_custom_call.1} parent=31 // pred_fallthru
          _
        %s269 = sand.u32 %s90, 1
        %s270 = scalar_lea.sflag [#allocation7], %s269
        %s271 = sand.u32 %s90, 1
        %s272 = smul.addr %s271, 2
        %s273 = scalar_lea.vmem [#allocation6], %s272
        // Predicated region
        $region37: #{tpu_custom_call.1} parent=31 // pred_check
          %p274 = pneg %p103
        $region38: #{tpu_custom_call.1} parent=31 // pred_check_branch
          %276 = sbr.rel (%p274) target = $region40
        $region39: #{tpu_custom_call.1} parent=31 // pred_region
          %277 = dma.done %s270, 32
        $region40: #{tpu_custom_call.1} parent=31 // pred_fallthru
          _
        // Predicated region
        $region41: #{tpu_custom_call.1} parent=31 // pred_check
          %p278 = pneg %p124
        $region42: #{tpu_custom_call.1} parent=31 // pred_check_branch
          %280 = sbr.rel (%p278) target = $region44
        $region43: #{tpu_custom_call.1} parent=31 // pred_region
          %281 = dma.done [#allocation5], 16
        $region44: #{tpu_custom_call.1} parent=31 // pred_fallthru
          _
        %282 = sfence
        %s283 = sand.u32 %s60, 1
        %s284 = scalar_lea.sflag [#allocation3], %s283
        %s285 = sand.u32 %s60, 1
        %s286 = smul.addr %s285, 8
        %s287 = scalar_lea.vmem [#allocation2], %s286
        %p288 = pneg %p73
        %p289 = pneg %p70
        %s290 = sand.u32 %s90, 1
        %s291 = scalar_lea.sflag [#allocation7], %s290
        %s292 = sand.u32 %s90, 1
        %s293 = smul.addr %s292, 2
        %s294 = scalar_lea.vmem [#allocation6], %s293
        %p295 = pneg %p103
        %p296 = pneg %p100
        %p297 = pneg %p124
        %p298 = pneg %p121
        %p299 = pneg %p152
        %p300 = pneg %p149
        %s301 = sand.u32 %s139, 1
        %s302 = scalar_lea.sflag [#allocation4], %s301
        %s303 = sand.u32 %s139, 1
        %s304 = smul.addr %s303, 2
        %s305 = scalar_lea.vmem [#allocation9], %s304
        %p306 = pneg %p180
        %p307 = pneg %p177
        %s308 = sand.u32 %s167, 1
        %s309 = scalar_lea.sflag [#allocation11], %s308
        %s310 = sand.u32 %s167, 1
        %s311 = smul.addr %s310, 2
        %s312 = scalar_lea.vmem [#allocation10], %s311
        %s313 = sadd.s32 %s35, %s36
        %s314 = sadd.s32 %s35, %s36
        %p315 = scmp.eq.s32.totalorder %s36, 0
        // Predicated region
        $region45: #{tpu_custom_call.1} parent=31 // pred_check
          %p316 = pneg %p315
        $region46: #{tpu_custom_call.1} parent=31 // pred_check_branch
          %318 = sbr.rel (%p316) target = $region48
        $region47: #{tpu_custom_call.1} parent=31 // pred_region
          %319 = vst [vmem:[%s305] sm:$0x3] 0.0
          %320 = vst [vmem:[%s312] sm:$0x3] 0.0
        $region48: #{tpu_custom_call.1} parent=31 // pred_fallthru
          _
        %v321 = vld [vmem:[%s273] sm:$0x3]
        %v322 = vld [vmem:[%s264] sm:$0x3]
        %vm323 = vcmp.eq.s32.totalorder %v321, 0
        %v324 = vsel %vm323, %v322, 0.0
        %s325 = sld [smem:[#allocation8]]
        %v326 = vstv %s325
        %v327 = vsel %vm323, %v326, 0.0
        %s328 = scalar_lea.vmem %s264, 2 [#allocation2]
        %v329 = vld [vmem:[%s328] sm:$0x3]
        %v330 = vmax.f32 %v322, %v329
        %v331 = vsub.f32 %v322, %v330
        %v332 = vmul.f32 %v331, 1.442695
        %v333 = vpow.pop %v332
        %v334 = vsub.f32 %v329, %v330
        %v335 = vmul.f32 %v334, 1.442695
        %v336 = vpow.pop %v335
        %v337 = vadd.f32 %v333, %v336
        %vm338 = vcmp.eq.s32.totalorder %v321, 1
        %v339 = vsel %vm338, %v329, %v324
        %s340 = sld [smem:[#allocation8 + $0x1]]
        %v341 = vstv %s340
        %v342 = vsel %vm338, %v341, %v327
        %s343 = scalar_lea.vmem %s264, 4 [#allocation2]
        %v344 = vld [vmem:[%s343] sm:$0x3]
        %v345 = vmax.f32 %v330, %v344
        %v346 = vsub.f32 %v330, %v345
        %v347 = vmul.f32 %v346, 1.442695
        %v348 = vpow.pop %v347
        %v349 = vmul.f32 %v337, %v348
        %v350 = vsub.f32 %v344, %v345
        %v351 = vmul.f32 %v350, 1.442695
        %v352 = vpow.pop %v351
        %v353 = vadd.f32 %v349, %v352
        %vm354 = vcmp.eq.s32.totalorder %v321, 2
        %v355 = vsel %vm354, %v344, %v339
        %s356 = sld [smem:[#allocation8 + $0x2]]
        %v357 = vstv %s356
        %v358 = vsel %vm354, %v357, %v342
        %s359 = scalar_lea.vmem %s264, 6 [#allocation2]
        %v360 = vld [vmem:[%s359] sm:$0x3]
        %v361 = vmax.f32 %v345, %v360
        %v362 = vsub.f32 %v345, %v361
        %v363 = vmul.f32 %v362, 1.442695
        %v364 = vpow.pop %v363
        %v365 = vmul.f32 %v353, %v364
        %v366 = vsub.f32 %v360, %v361
        %v367 = vmul.f32 %v366, 1.442695
        %v368 = vpow.pop %v367
        %v369 = vadd.f32 %v365, %v368
        %vm370 = vcmp.eq.s32.totalorder %v321, 3
        %v371 = vsel %vm370, %v360, %v355
        %s372 = sld [smem:[#allocation8 + $0x3]]
        %v373 = vstv %s372
        %v374 = vsel %vm370, %v373, %v358
        %v375 = vsub.f32 %v371, %v361
        %v376 = vlog2.pop %v369
        %v377 = vmul.f32 %v376, 0.6931472
        %v378 = vsub.f32 %v375, %v377
        %v379 = vmul.f32 %v378, 1.442695
        %v380 = vpow.pop %v379
        %v381 = vsub.f32 1.0, %v380
        %v382 = vmul.f32 %v381, %v381
        %v383 = vmul.f32 %v374, %v378
        %v384 = vmul.f32 %v382, %v383
        %v385 = vsub.f32 0.0, %v384
        %vm386 = vcmp.ge.s32.totalorder %v321, 0
        %vm387 = vcmp.lt.s32.totalorder %v321, 4
        %vm388 = vmand %vm386, %vm387
        %v389 = vsel %vm388, %v385, 0.0
        %v390 = vsel %vm388, 1.0, 0.0
        %v391 = vld [vmem:[%s305] sm:$0x3]
        %v392 = vadd.f32 %v391, %v389
        %393 = vst [vmem:[%s305] sm:$0x3] %v392
        %v394 = vld [vmem:[%s312] sm:$0x3]
        %v395 = vadd.f32 %v394, %v390
        %396 = vst [vmem:[%s312] sm:$0x3] %v395
        %s397 = sand.u32 %s139, 1
        %s398 = scalar_lea.sflag [#allocation4], %s397
        %s399 = sand.u32 %s139, 1
        %s400 = smul.addr %s399, 2
        %s401 = scalar_lea.vmem [#allocation9], %s400
        %s402 = sand.u32 %s167, 1
        %s403 = scalar_lea.sflag [#allocation11], %s402
        %s404 = sand.u32 %s167, 1
        %s405 = smul.addr %s404, 2
        %s406 = scalar_lea.vmem [#allocation10], %s405
        // Predicated region
        $region49: #{tpu_custom_call.1} parent=31 // pred_check
          %p407 = pneg %p149
        $region50: #{tpu_custom_call.1} parent=31 // pred_check_branch
          %409 = sbr.rel (%p407) target = $region52
        $region51: #{tpu_custom_call.1} parent=31 // pred_region
          %s411 = ssub.s32 32, 32
          %412 = vsyncadd %s398, %s411
          %s413 = sadd.s32 %s35, %s34
          %s414 = smul.addr %s413, 32
          %s415 = scalar_lea.hbm %s3, %s414
          %s417 = sshll.u32 %s401, 4
          %s418 = int_to_ptr.vmem [resolvable:$true] %s417
          %420 = dma.vmem_to_hbm [thread:$0]  %s418, 32, %s415, %s398
        $region52: #{tpu_custom_call.1} parent=31 // pred_fallthru
          _
        // Predicated region
        $region53: #{tpu_custom_call.1} parent=31 // pred_check
          %p421 = pneg %p177
        $region54: #{tpu_custom_call.1} parent=31 // pred_check_branch
          %423 = sbr.rel (%p421) target = $region56
        $region55: #{tpu_custom_call.1} parent=31 // pred_region
          %s425 = ssub.s32 32, 32
          %426 = vsyncadd %s403, %s425
          %s427 = sadd.s32 %s35, %s34
          %s428 = smul.addr %s427, 32
          %s429 = scalar_lea.hbm %s4, %s428
          %s431 = sshll.u32 %s406, 4
          %s432 = int_to_ptr.vmem [resolvable:$true] %s431
          %434 = dma.vmem_to_hbm [thread:$0]  %s432, 32, %s429, %s403
        $region56: #{tpu_custom_call.1} parent=31 // pred_fallthru
          _
      $region32: #{tpu_custom_call.1} parent=5 // pred_fallthru
        _
      %p435 = scmp.le.s32.totalorder 2, %s24
      // Predicated region
      $region57: #{tpu_custom_call.1} parent=5 // pred_check
        %p436 = pneg %p435
      $region58: #{tpu_custom_call.1} parent=5 // pred_check_branch
        %438 = sbr.rel (%p436) target = $region60
      $region59: #{tpu_custom_call.1} parent=5 // pred_region
        %s439 = ssub.s32 %s24, 2
        // Predicated region
        $region61: #{tpu_custom_call.1} parent=59 // pred_check
          %p440 = pneg %p155
        $region62: #{tpu_custom_call.1} parent=59 // pred_check_branch
          %442 = sbr.rel (%p440) target = $region64
        $region63: #{tpu_custom_call.1} parent=59 // pred_region
          %s443 = sand.u32 %s140, 1
          %s444 = scalar_lea.sflag [#allocation4], %s443
          %s445 = sand.u32 %s140, 1
          %s446 = smul.addr %s445, 2
          %s447 = scalar_lea.vmem [#allocation9], %s446
          %448 = dma.done %s444, 32
        $region64: #{tpu_custom_call.1} parent=59 // pred_fallthru
          _
        // Predicated region
        $region65: #{tpu_custom_call.1} parent=59 // pred_check
          %p449 = pneg %p183
        $region66: #{tpu_custom_call.1} parent=59 // pred_check_branch
          %451 = sbr.rel (%p449) target = $region68
        $region67: #{tpu_custom_call.1} parent=59 // pred_region
          %s452 = sand.u32 %s168, 1
          %s453 = scalar_lea.sflag [#allocation11], %s452
          %s454 = sand.u32 %s168, 1
          %s455 = smul.addr %s454, 2
          %s456 = scalar_lea.vmem [#allocation10], %s455
          %457 = dma.done %s453, 32
        $region68: #{tpu_custom_call.1} parent=59 // pred_fallthru
          _
      $region60: #{tpu_custom_call.1} parent=5 // pred_fallthru
        _
    $region6: #{tpu_custom_call.1} parent=1 // loop_footer
      %s28 = sadd.s32 1, %s24
    $region7: #{tpu_custom_call.1} parent=1 // loop_footer_branch
      %23 = sbr.rel target = $region3
    $region8: #{tpu_custom_call.1} parent=1 // loop_exit
      _
    %458 = vsyncpa [#allocation3], 1
    %s459 = scalar_lea.sflag [#allocation3], 1
    %460 = vsyncpa %s459, 1
    %461 = vsyncpa [#allocation7], 1
    %s462 = scalar_lea.sflag [#allocation7], 1
    %463 = vsyncpa %s462, 1
    %464 = vsyncpa [#allocation4], 1
    %s465 = scalar_lea.sflag [#allocation4], 1
    %466 = vsyncpa %s465, 1
    %467 = vsyncpa [#allocation11], 1
    %s468 = scalar_lea.sflag [#allocation11], 1
    %469 = vsyncpa %s468, 1
    %470 = vsyncpa [#allocation5], 1
    %s471 = scalar_lea.sflag [#allocation5], 1
    %472 = vsyncpa %s471, 1

</llo_original>
